<compile_context>
chip_gen: v7x
topology: tpu7x:2x2x1
jax: 0.10.0
libtpu: 0.0.40
codegen_flags: <defaults>
</compile_context>

<pallas_src>
import functools
import math

import jax
import jax.numpy as jnp
from jax.experimental import pallas as pl
from jax.experimental.pallas import tpu as pltpu

_INV_SQRT2 = 1.0 / math.sqrt(2.0)


def _gelu_f32(h):
    # Exact erf-based GELU (matches torch.nn.GELU default), computed in f32.
    return 0.5 * h * (1.0 + jax.lax.erf(h * _INV_SQRT2))


def _fused_kernel(x_ref, w1_ref, b1_ref, w2_ref, b2_ref, o_ref, *, compute_dtype):
    # Single output-column step: both layers fused, no h scratch round-trip.
    # Operands are cast to the MXU compute dtype in-kernel (they stay in their
    # stored dtype in HBM/VMEM blocks).
    x = x_ref[...].astype(compute_dtype)
    h = jnp.dot(x, w1_ref[...].astype(compute_dtype),
                preferred_element_type=jnp.float32)
    h = _gelu_f32(h + b1_ref[...])
    y = jnp.dot(h.astype(compute_dtype), w2_ref[...].astype(compute_dtype),
                preferred_element_type=jnp.float32)
    o_ref[...] = (y + b2_ref[...]).astype(o_ref.dtype)


def _tiled_kernel(x_ref, w1_ref, b1_ref, w2_ref, b2_ref, o_ref, h_ref, *,
                  compute_dtype):
    # W2 column-tiled along grid axis 1. The hidden activation is computed once
    # per batch tile (on the first column step) and cached in VMEM scratch.
    @pl.when(pl.program_id(1) == 0)
    def _():
        h = jnp.dot(x_ref[...].astype(compute_dtype),
                    w1_ref[...].astype(compute_dtype),
                    preferred_element_type=jnp.float32)
        h_ref[...] = _gelu_f32(h + b1_ref[...]).astype(h_ref.dtype)

    y = jnp.dot(h_ref[...], w2_ref[...].astype(compute_dtype),
                preferred_element_type=jnp.float32)
    o_ref[...] = (y + b2_ref[...]).astype(o_ref.dtype)


def _round_up(x, m):
    return ((x + m - 1) // m) * m


def _vmem_capacity_bytes():
    # Device-aware VMEM capacity (v5e/v6e: 128 MiB, v7x: 64 MiB per TC).
    try:
        cap = getattr(pltpu.get_tpu_info(), "vmem_capacity_bytes", None)
        if cap:
            return int(cap)
    except Exception:
        pass
    return 64 << 20  # conservative fallback = v7x per-TensorCore VMEM


@functools.partial(
    jax.jit, static_argnames=("block_b", "block_n", "compute_dtype", "out_dtype"))
def projection_head(x, w1, b1, w2, b2, *, block_b=256, block_n=None,
                    compute_dtype=jnp.bfloat16, out_dtype=None):
    """x: (B, in_dim); w1: (in_dim, out_dim); w2: (out_dim, out_dim)."""
    B, in_dim = x.shape
    out_dim = w1.shape[1]
    assert w1.shape == (in_dim, out_dim)
    assert w2.shape == (out_dim, out_dim)
    assert b1.shape == (out_dim,) and b2.shape == (out_dim,)
    out_dtype = x.dtype if out_dtype is None else out_dtype

    vmem_cap = _vmem_capacity_bytes()
    cbytes = jnp.dtype(compute_dtype).itemsize
    obytes = jnp.dtype(out_dtype).itemsize
    xbytes = jnp.dtype(x.dtype).itemsize
    w1bytes = jnp.dtype(w1.dtype).itemsize
    w2bytes = jnp.dtype(w2.dtype).itemsize

    # ---- Batch tile: multiple of 16 (bf16 packs 2 rows per sublane) ---------
    bb = _round_up(min(block_b, B), 16)
    # Forced megacore split only when plausibly compute-bound; at small B the
    # kernel is weight-bandwidth-bound and splitting duplicates weight DMA on
    # both v7x TensorCores.
    if B >= 512 and pl.cdiv(B, bb) == 1:
        bb = _round_up(pl.cdiv(B, 2), 16)

    # ---- Output-column tile for W2 (VMEM-aware residency threshold) ---------
    w2_footprint = out_dim * out_dim * (w2bytes + cbytes)  # block + in-kernel cast
    if block_n is None:
        block_n = out_dim if w2_footprint <= vmem_cap // 4 else 512
    bn = min(block_n, out_dim)
    if bn < out_dim:
        # 256-wide MXU on v6e/v7x: round the column tile UP to a 256 multiple.
        # Never silently fall back to a fully resident W2 (VMEM blow-up on v7x).
        bn = min(_round_up(bn, 256), out_dim)
    single_step = bn == out_dim

    # TODO(synk): tile W1's hidden dimension (extra grid axis / inner pipeline
    # writing h_ref column slices) when in_dim*out_dim exceeds ~1/3 of VMEM;
    # untiled W1 is fine for this head's small hidden dims (out_dim default 256).

    # Biases are tiny: reshape to (1, out_dim) f32 rows for broadcasting.
    b1_r = b1.reshape(1, out_dim).astype(jnp.float32)
    b2_r = b2.reshape(1, out_dim).astype(jnp.float32)

    resident = dict(pipeline_mode=pl.Buffered(1))  # constant blocks, no re-fetch
    headroom = vmem_cap - (8 << 20)

    if single_step:
        grid = (pl.cdiv(B, bb),)
        vmem_estimate = (
            2 * bb * in_dim * xbytes                      # x tile, double-buffered
            + in_dim * out_dim * (w1bytes + cbytes)       # W1 block + bf16 copy
            + out_dim * out_dim * (w2bytes + cbytes)      # W2 block + bf16 copy
            + 2 * out_dim * 4                             # biases (f32)
            + 2 * bb * out_dim * obytes                   # output tile, double-buffered
            + bb * in_dim * cbytes                        # x bf16 copy
            + bb * out_dim * (4 + cbytes + 8)             # h f32, h bf16, GELU temps
        )
        vmem_limit = max(min(int(vmem_estimate * 1.5) + (4 << 20), headroom), 16 << 20)
        kernel = functools.partial(_fused_kernel, compute_dtype=compute_dtype)
        return pl.pallas_call(
            kernel,
            out_shape=jax.ShapeDtypeStruct((B, out_dim), out_dtype),
            grid=grid,
            in_specs=[
                pl.BlockSpec((bb, in_dim), lambda i: (i, 0)),                   # x
                pl.BlockSpec((in_dim, out_dim), lambda i: (0, 0), **resident),  # W1
                pl.BlockSpec((1, out_dim), lambda i: (0, 0), **resident),       # b1
                pl.BlockSpec((out_dim, out_dim), lambda i: (0, 0), **resident), # W2
                pl.BlockSpec((1, out_dim), lambda i: (0, 0), **resident),       # b2
            ],
            out_specs=pl.BlockSpec((bb, out_dim), lambda i: (i, 0)),
            compiler_params=pltpu.CompilerParams(
                dimension_semantics=("parallel",),
                vmem_limit_bytes=vmem_limit,
            ),
        )(x, w1, b1_r, w2, b2_r)

    # ---- Column-tiled path (bn < out_dim) ------------------------------------
    grid = (pl.cdiv(B, bb), pl.cdiv(out_dim, bn))
    w2_depth = min(3, pl.cdiv(out_dim, bn))  # deeper pipeline hides uneven j==0 step
    w2_mode = dict(pipeline_mode=pl.Buffered(w2_depth))
    vmem_estimate = (
        2 * bb * in_dim * xbytes
        + in_dim * out_dim * (w1bytes + cbytes)
        + w2_depth * out_dim * bn * w2bytes + out_dim * bn * cbytes
        + (out_dim + w2_depth * bn) * 4
        + 2 * bb * bn * obytes
        + bb * out_dim * cbytes                 # h scratch (bf16)
        + bb * in_dim * cbytes                  # x bf16 copy
        + bb * out_dim * (4 + 8)                # f32 h + GELU temps on j==0
    )
    vmem_limit = max(min(int(vmem_estimate * 1.5) + (4 << 20), headroom), 16 << 20)
    kernel = functools.partial(_tiled_kernel, compute_dtype=compute_dtype)
    return pl.pallas_call(
        kernel,
        out_shape=jax.ShapeDtypeStruct((B, out_dim), out_dtype),
        grid=grid,
        in_specs=[
            pl.BlockSpec((bb, in_dim), lambda i, j: (i, 0)),                   # x
            pl.BlockSpec((in_dim, out_dim), lambda i, j: (0, 0), **resident),  # W1
            pl.BlockSpec((1, out_dim), lambda i, j: (0, 0), **resident),       # b1
            pl.BlockSpec((out_dim, bn), lambda i, j: (0, j), **w2_mode),       # W2
            pl.BlockSpec((1, bn), lambda i, j: (0, j), **w2_mode),             # b2
        ],
        out_specs=pl.BlockSpec((bb, bn), lambda i, j: (i, j)),
        scratch_shapes=[pltpu.VMEM((bb, out_dim), compute_dtype)],             # h
        compiler_params=pltpu.CompilerParams(
            dimension_semantics=("parallel", "arbitrary"),
            vmem_limit_bytes=vmem_limit,
        ),
    )(x, w1, b1_r, w2, b2_r)


def xavier_uniform(key, fan_in, fan_out, dtype=jnp.float32):
    # Matches torch.nn.init.xavier_uniform_: a = sqrt(6/(fan_in+fan_out)).
    # Stored as (fan_in, fan_out) = transpose of PyTorch's (out, in) layout;
    # xavier bounds are symmetric in fan_in/fan_out so the distribution matches.
    a = math.sqrt(6.0 / (fan_in + fan_out))
    return jax.random.uniform(key, (fan_in, fan_out), dtype=dtype, minval=-a, maxval=a)


def projection_head_ref(x, w1, b1, w2, b2):
    h = x @ w1 + b1
    h = 0.5 * h * (1.0 + jax.lax.erf(h * _INV_SQRT2))
    return h @ w2 + b2


if __name__ == "__main__":
    key = jax.random.PRNGKey(0)
    k_x, k_w1, k_w2, k_w3, k_w4 = jax.random.split(key, 5)

    # bf16 MXU operands with f32 accumulation vs the pure-f32 reference.
    tol = dict(atol=5e-2, rtol=5e-2)

    # ---- Case 1: module defaults (out_dim=256) -> fused single-step kernel ----
    # batch deliberately not a multiple of the tile to exercise ragged tails.
    batch, in_dim, out_dim = 100, 128, 256
    x = jax.random.normal(k_x, (batch, in_dim), dtype=jnp.float32)
    w1 = xavier_uniform(k_w1, in_dim, out_dim)     # Linear(in_dim, out_dim)
    b1 = jnp.zeros((out_dim,), jnp.float32)        # constant_(bias, 0)
    w2 = xavier_uniform(k_w2, out_dim, out_dim)    # Linear(out_dim, out_dim)
    b2 = jnp.zeros((out_dim,), jnp.float32)
    ref = projection_head_ref(x, w1, b1, w2, b2)

    out = jax.block_until_ready(projection_head(x, w1, b1, w2, b2))
    assert out.shape == (batch, out_dim)
    assert jnp.allclose(out, ref, **tol), float(jnp.max(jnp.abs(out - ref)))

    # Small batch tiles -> multiple ragged batch steps through the fused kernel.
    out_s = jax.block_until_ready(projection_head(x, w1, b1, w2, b2, block_b=48))
    assert jnp.allclose(out_s, ref, **tol), float(jnp.max(jnp.abs(out_s - ref)))

    # ---- Case 2: larger out_dim with explicit column tiling of W2 -------------
    out_dim2 = 512
    w1b = xavier_uniform(k_w3, in_dim, out_dim2)
    b1b = jnp.zeros((out_dim2,), jnp.float32)
    w2b = xavier_uniform(k_w4, out_dim2, out_dim2)
    b2b = jnp.zeros((out_dim2,), jnp.float32)
    ref2 = projection_head_ref(x, w1b, b1b, w2b, b2b)

    out2 = jax.block_until_ready(
        projection_head(x, w1b, b1b, w2b, b2b, block_b=32, block_n=256))
    assert out2.shape == (batch, out_dim2)
    assert jnp.allclose(out2, ref2, **tol), float(jnp.max(jnp.abs(out2 - ref2)))

    print("KERNEL_OK")
</pallas_src>

<mosaic_0001>
module attributes {stable_mosaic.version = 11 : i64} {
  func.func @_fused_kernel(%arg0: i32, %arg1: memref<112x128xf32, #tpu.memory_space<vmem>>, %arg2: memref<128x256xf32, #tpu.memory_space<vmem>>, %arg3: memref<1x256xf32, #tpu.memory_space<vmem>>, %arg4: memref<256x256xf32, #tpu.memory_space<vmem>>, %arg5: memref<1x256xf32, #tpu.memory_space<vmem>>, %arg6: memref<112x256xf32, #tpu.memory_space<vmem>>) attributes {dimension_semantics = [#tpu.dimension_semantics<parallel>], iteration_bounds = array<i64: 1>, scalar_prefetch = 0 : i64, scratch_operands = 0 : i64, tpu.core_type = #tpu.core_type<tc>, window_params = [{transform_indices = @transform_0, window_bounds = array<i64: 112, 128>}, {pipeline_mode = #tpu.pipeline_mode<synchronous>, transform_indices = @transform_1, window_bounds = array<i64: 128, 256>}, {pipeline_mode = #tpu.pipeline_mode<synchronous>, transform_indices = @transform_2, window_bounds = array<i64: 1, 256>}, {pipeline_mode = #tpu.pipeline_mode<synchronous>, transform_indices = @transform_3, window_bounds = array<i64: 256, 256>}, {pipeline_mode = #tpu.pipeline_mode<synchronous>, transform_indices = @transform_4, window_bounds = array<i64: 1, 256>}, {transform_indices = @transform_5, window_bounds = array<i64: 112, 256>}]} {
    %c0 = arith.constant 0 : index
    %c0_0 = arith.constant 0 : index
    %0 = vector.load %arg1[%c0, %c0_0] : memref<112x128xf32, #tpu.memory_space<vmem>>, vector<112x128xf32>
    %1 = arith.truncf %0 : vector<112x128xf32> to vector<112x128xbf16>
    %c0_1 = arith.constant 0 : index
    %c0_2 = arith.constant 0 : index
    %2 = vector.load %arg2[%c0_1, %c0_2] : memref<128x256xf32, #tpu.memory_space<vmem>>, vector<128x256xf32>
    %3 = arith.truncf %2 : vector<128x256xf32> to vector<128x256xbf16>
    %cst = arith.constant dense<0.000000e+00> : vector<112x256xf32>
    %4 = tpu.matmul %1, %3, %cst {dimension_numbers = #tpu.dot_dimension_numbers<[1], [0], [0], [1], [0, 0, 1, 1], [], []>} : vector<112x128xbf16>, vector<128x256xbf16>, vector<112x256xf32> -> vector<112x256xf32>
    %c0_3 = arith.constant 0 : index
    %c0_4 = arith.constant 0 : index
    %5 = vector.load %arg3[%c0_3, %c0_4] : memref<1x256xf32, #tpu.memory_space<vmem>>, vector<1x256xf32>
    %6 = vector.broadcast %5 : vector<1x256xf32> to vector<112x256xf32>
    %7 = arith.addf %4, %6 : vector<112x256xf32>
    %cst_5 = arith.constant 5.000000e-01 : f32
    %8 = vector.broadcast %cst_5 : f32 to vector<112x256xf32>
    %9 = arith.mulf %8, %7 : vector<112x256xf32>
    %cst_6 = arith.constant 0.707106769 : f32
    %10 = vector.broadcast %cst_6 : f32 to vector<112x256xf32>
    %11 = arith.mulf %7, %10 : vector<112x256xf32>
    %12 = math.erf %11 : vector<112x256xf32>
    %cst_7 = arith.constant 1.000000e+00 : f32
    %13 = vector.broadcast %cst_7 : f32 to vector<112x256xf32>
    %14 = arith.addf %13, %12 : vector<112x256xf32>
    %15 = arith.mulf %9, %14 : vector<112x256xf32>
    %16 = arith.truncf %15 : vector<112x256xf32> to vector<112x256xbf16>
    %c0_8 = arith.constant 0 : index
    %c0_9 = arith.constant 0 : index
    %17 = vector.load %arg4[%c0_8, %c0_9] : memref<256x256xf32, #tpu.memory_space<vmem>>, vector<256x256xf32>
    %18 = arith.truncf %17 : vector<256x256xf32> to vector<256x256xbf16>
    %cst_10 = arith.constant dense<0.000000e+00> : vector<112x256xf32>
    %19 = tpu.matmul %16, %18, %cst_10 {dimension_numbers = #tpu.dot_dimension_numbers<[1], [0], [0], [1], [0, 0, 1, 1], [], []>} : vector<112x256xbf16>, vector<256x256xbf16>, vector<112x256xf32> -> vector<112x256xf32>
    %c0_11 = arith.constant 0 : index
    %c0_12 = arith.constant 0 : index
    %20 = vector.load %arg5[%c0_11, %c0_12] : memref<1x256xf32, #tpu.memory_space<vmem>>, vector<1x256xf32>
    %21 = vector.broadcast %20 : vector<1x256xf32> to vector<112x256xf32>
    %22 = arith.addf %19, %21 : vector<112x256xf32>
    %c0_13 = arith.constant 0 : index
    %c0_14 = arith.constant 0 : index
    %23 = vector.load %arg6[%c0_13, %c0_14] : memref<112x256xf32, #tpu.memory_space<vmem>>, vector<112x256xf32>
    tpu.vector_store %arg6[%c0_13, %c0_14], %22 {strides = array<i32>} : memref<112x256xf32, #tpu.memory_space<vmem>>, vector<112x256xf32>,
    return
  }
  func.func @transform_0(%arg0: i32) -> (i32, i32) {
    %c0_i32 = arith.constant 0 : i32
    %c0_i32_0 = arith.constant 0 : i32
    return %arg0, %c0_i32 : i32, i32
  }
  func.func @transform_1(%arg0: i32) -> (i32, i32) {
    %c0_i32 = arith.constant 0 : i32
    %c0_i32_0 = arith.constant 0 : i32
    %c0_i32_1 = arith.constant 0 : i32
    return %c0_i32, %c0_i32_0 : i32, i32
  }
  func.func @transform_2(%arg0: i32) -> (i32, i32) {
    %c0_i32 = arith.constant 0 : i32
    %c0_i32_0 = arith.constant 0 : i32
    %c0_i32_1 = arith.constant 0 : i32
    return %c0_i32, %c0_i32_0 : i32, i32
  }
  func.func @transform_3(%arg0: i32) -> (i32, i32) {
    %c0_i32 = arith.constant 0 : i32
    %c0_i32_0 = arith.constant 0 : i32
    %c0_i32_1 = arith.constant 0 : i32
    return %c0_i32, %c0_i32_0 : i32, i32
  }
  func.func @transform_4(%arg0: i32) -> (i32, i32) {
    %c0_i32 = arith.constant 0 : i32
    %c0_i32_0 = arith.constant 0 : i32
    %c0_i32_1 = arith.constant 0 : i32
    return %c0_i32, %c0_i32_0 : i32, i32
  }
  func.func @transform_5(%arg0: i32) -> (i32, i32) {
    %c0_i32 = arith.constant 0 : i32
    %c0_i32_0 = arith.constant 0 : i32
    return %arg0, %c0_i32 : i32, i32
  }
}

</mosaic_0001>

<llo_original>
// kernel: projection_head.1
$region0: #{projection_head.1}
  #allocation0 [shape = 'u32[]', space=smem, size = 0x4, offset = 0x4, fixed_abs, tag = 'smem constant byte address 0x4 - core index']
  #allocation1 [shape = 'u32[144,128]{1,0:T(1,128)}', space=vmem, size = 0x12000, scoped, tag = 'internal scratch']
  %s0 = inlined_call_operand.hbm [shape: f32[100,128], index: 0, kind: input, shape index: {}]
  %s1 = inlined_call_operand.hbm [shape: f32[128,256], index: 1, kind: input, shape index: {}]
  %s2 = inlined_call_operand.vmem [shape: f32[1,256], index: 2, kind: input, shape index: {}]
  %s3 = inlined_call_operand.hbm [shape: f32[256,256], index: 3, kind: input, shape index: {}]
  %s4 = inlined_call_operand.vmem [shape: f32[1,256], index: 4, kind: input, shape index: {}]
  %s5 = inlined_call_operand.hbm [shape: f32[100,256], index: 5, kind: output, shape index: {}]
  %s6 = sld [smem:[#allocation0]]
  $region42: #{projection_head.1} parent=0
    _
  %s8 = ssub.s32 1, %s6
  %s9 = scalar_select 0, %s8, %s6
  $region1: #{projection_head.1} parent=0
    #allocation2 [shape = 'u8[57344]{0}', space=vmem, size = 0xe000, scoped, tag = 'input window, operand 0, single buffered']
    #allocation3 [shape = 's32[1]{0}', space=sflag, size = 0x4, scoped, tag = 'scoped memory for projection_head.1']
    #allocation4 [shape = 's32[1]{0}', space=sflag, size = 0x4, scoped, tag = 'scoped memory for projection_head.1']
    #allocation5 [shape = 'u8[131072]{0}', space=vmem, size = 0x20000, scoped, tag = 'input window, operand 1, single buffered']
    #allocation6 [shape = 's32[1]{0}', space=sflag, size = 0x4, scoped, tag = 'scoped memory for projection_head.1']
    #allocation7 [shape = 'u8[262144]{0}', space=vmem, size = 0x40000, scoped, tag = 'input window, operand 3, single buffered']
    #allocation8 [shape = 'u8[114688]{0}', space=vmem, size = 0x1c000, scoped, tag = 'output window, operand 0, single buffered']
    %10 = vsyncpa [#allocation3], 0
    %11 = vsyncpa [#allocation6], 0
    %12 = vsyncpa [#allocation4], 0
    // Predicated region
    $region2: #{projection_head.1} parent=1 // pred_check
      _
    $region3: #{projection_head.1} parent=1 // pred_check_branch
      %14 = sbr.rel (0) target = $region5
    $region4: #{projection_head.1} parent=1 // pred_region
      %s16 = ssub.s32 1792, 1664
      %17 = vsyncadd [#allocation3], %s16
      %s18 = sshll.u32 [#allocation2], 4
      %s19 = int_to_ptr.vmem [resolvable:$true] %s18
      %24 = dma.hbm_to_vmem [thread:$0]  %s0, 1664, %s19, [#allocation3], 128, 128, 8
    $region5: #{projection_head.1} parent=1 // pred_fallthru
      _
    // Predicated region
    $region6: #{projection_head.1} parent=1 // pred_check
      _
    $region7: #{projection_head.1} parent=1 // pred_check_branch
      %26 = sbr.rel (0) target = $region9
    $region8: #{projection_head.1} parent=1 // pred_region
      %s28 = ssub.s32 4096, 4096
      %29 = vsyncadd [#allocation6], %s28
      %s30 = sshll.u32 [#allocation5], 4
      %s31 = int_to_ptr.vmem [resolvable:$true] %s30
      %36 = dma.hbm_to_vmem [thread:$0]  %s1, 4096, %s31, [#allocation6], 256, 256, 16
    $region9: #{projection_head.1} parent=1 // pred_fallthru
      _
    // Predicated region
    $region10: #{projection_head.1} parent=1 // pred_check
      _
    $region11: #{projection_head.1} parent=1 // pred_check_branch
      %38 = sbr.rel (0) target = $region13
    $region12: #{projection_head.1} parent=1 // pred_region
      _
    $region13: #{projection_head.1} parent=1 // pred_fallthru
      _
    // Predicated region
    $region14: #{projection_head.1} parent=1 // pred_check
      _
    $region15: #{projection_head.1} parent=1 // pred_check_branch
      %40 = sbr.rel (0) target = $region17
    $region16: #{projection_head.1} parent=1 // pred_region
      %s42 = ssub.s32 8192, 8192
      %43 = vsyncadd [#allocation6], %s42
      %s44 = sshll.u32 [#allocation7], 4
      %s45 = int_to_ptr.vmem [resolvable:$true] %s44
      %50 = dma.hbm_to_vmem [thread:$0]  %s3, 8192, %s45, [#allocation6], 256, 256, 16
    $region17: #{projection_head.1} parent=1 // pred_fallthru
      _
    // Predicated region
    $region18: #{projection_head.1} parent=1 // pred_check
      _
    $region19: #{projection_head.1} parent=1 // pred_check_branch
      %52 = sbr.rel (0) target = $region21
    $region20: #{projection_head.1} parent=1 // pred_region
      _
    $region21: #{projection_head.1} parent=1 // pred_fallthru
      _
    // Predicated region
    $region22: #{projection_head.1} parent=1 // pred_check
      _
    $region23: #{projection_head.1} parent=1 // pred_check_branch
      %54 = sbr.rel (0) target = $region25
    $region24: #{projection_head.1} parent=1 // pred_region
      %55 = dma.done [#allocation3], 1792
    $region25: #{projection_head.1} parent=1 // pred_fallthru
      _
    // Predicated region
    $region26: #{projection_head.1} parent=1 // pred_check
      _
    $region27: #{projection_head.1} parent=1 // pred_check_branch
      %57 = sbr.rel (0) target = $region29
    $region28: #{projection_head.1} parent=1 // pred_region
      %58 = dma.done [#allocation6], 4096
    $region29: #{projection_head.1} parent=1 // pred_fallthru
      _
    // Predicated region
    $region30: #{projection_head.1} parent=1 // pred_check
      _
    $region31: #{projection_head.1} parent=1 // pred_check_branch
      %60 = sbr.rel (0) target = $region33
    $region32: #{projection_head.1} parent=1 // pred_region
      %61 = dma.done [#allocation6], 8192
    $region33: #{projection_head.1} parent=1 // pred_fallthru
      _
    %v63 = vld [vmem:[#allocation2] sm:$0xff]
    %v64 = vld [vmem:[#allocation2 + $0x8] sm:$0xff]
    %v65 = vld [vmem:[#allocation2 + $0x10] sm:$0xff]
    %v66 = vld [vmem:[#allocation2 + $0x18] sm:$0xff]
    %v67 = vld [vmem:[#allocation2 + $0x20] sm:$0xff]
    %v68 = vld [vmem:[#allocation2 + $0x28] sm:$0xff]
    %v69 = vld [vmem:[#allocation2 + $0x30] sm:$0xff]
    %v70 = vld [vmem:[#allocation2 + $0x38] sm:$0xff]
    %v71 = vld [vmem:[#allocation2 + $0x40] sm:$0xff]
    %v72 = vld [vmem:[#allocation2 + $0x48] sm:$0xff]
    %v73 = vld [vmem:[#allocation2 + $0x50] sm:$0xff]
    %v74 = vld [vmem:[#allocation2 + $0x58] sm:$0xff]
    %v75 = vld [vmem:[#allocation2 + $0x60] sm:$0xff]
    %v76 = vld [vmem:[#allocation2 + $0x68] sm:$0xff]
    %v77 = vpack.c.bf16 %v64, %v63
    %v78 = vpack.c.bf16 %v66, %v65
    %v79 = vpack.c.bf16 %v68, %v67
    %v80 = vpack.c.bf16 %v70, %v69
    %v81 = vpack.c.bf16 %v72, %v71
    %v82 = vpack.c.bf16 %v74, %v73
    %v83 = vpack.c.bf16 %v76, %v75
    %v84 = vld [vmem:[#allocation5] sm:$0xff]
    %v85 = vld [vmem:[#allocation5 + $0x8] sm:$0xff]
    %v86 = vld [vmem:[#allocation5 + $0x10] sm:$0xff]
    %v87 = vld [vmem:[#allocation5 + $0x18] sm:$0xff]
    %v88 = vld [vmem:[#allocation5 + $0x20] sm:$0xff]
    %v89 = vld [vmem:[#allocation5 + $0x28] sm:$0xff]
    %v90 = vld [vmem:[#allocation5 + $0x30] sm:$0xff]
    %v91 = vld [vmem:[#allocation5 + $0x38] sm:$0xff]
    %v92 = vld [vmem:[#allocation5 + $0x40] sm:$0xff]
    %v93 = vld [vmem:[#allocation5 + $0x48] sm:$0xff]
    %v94 = vld [vmem:[#allocation5 + $0x50] sm:$0xff]
    %v95 = vld [vmem:[#allocation5 + $0x58] sm:$0xff]
    %v96 = vld [vmem:[#allocation5 + $0x60] sm:$0xff]
    %v97 = vld [vmem:[#allocation5 + $0x68] sm:$0xff]
    %v98 = vld [vmem:[#allocation5 + $0x70] sm:$0xff]
    %v99 = vld [vmem:[#allocation5 + $0x78] sm:$0xff]
    %v100 = vld [vmem:[#allocation5 + $0x80] sm:$0xff]
    %v101 = vld [vmem:[#allocation5 + $0x88] sm:$0xff]
    %v102 = vld [vmem:[#allocation5 + $0x90] sm:$0xff]
    %v103 = vld [vmem:[#allocation5 + $0x98] sm:$0xff]
    %v104 = vld [vmem:[#allocation5 + $0xa0] sm:$0xff]
    %v105 = vld [vmem:[#allocation5 + $0xa8] sm:$0xff]
    %v106 = vld [vmem:[#allocation5 + $0xb0] sm:$0xff]
    %v107 = vld [vmem:[#allocation5 + $0xb8] sm:$0xff]
    %v108 = vld [vmem:[#allocation5 + $0xc0] sm:$0xff]
    %v109 = vld [vmem:[#allocation5 + $0xc8] sm:$0xff]
    %v110 = vld [vmem:[#allocation5 + $0xd0] sm:$0xff]
    %v111 = vld [vmem:[#allocation5 + $0xd8] sm:$0xff]
    %v112 = vld [vmem:[#allocation5 + $0xe0] sm:$0xff]
    %v113 = vld [vmem:[#allocation5 + $0xe8] sm:$0xff]
    %v114 = vld [vmem:[#allocation5 + $0xf0] sm:$0xff]
    %v115 = vld [vmem:[#allocation5 + $0xf8] sm:$0xff]
    %v116 = vpack.c.bf16 %v86, %v84
    %v117 = vpack.c.bf16 %v87, %v85
    %v118 = vpack.c.bf16 %v90, %v88
    %v119 = vpack.c.bf16 %v91, %v89
    %v120 = vpack.c.bf16 %v94, %v92
    %v121 = vpack.c.bf16 %v95, %v93
    %v122 = vpack.c.bf16 %v98, %v96
    %v123 = vpack.c.bf16 %v99, %v97
    %v124 = vpack.c.bf16 %v102, %v100
    %v125 = vpack.c.bf16 %v103, %v101
    %v126 = vpack.c.bf16 %v106, %v104
    %v127 = vpack.c.bf16 %v107, %v105
    %v128 = vpack.c.bf16 %v110, %v108
    %v129 = vpack.c.bf16 %v111, %v109
    %v130 = vpack.c.bf16 %v114, %v112
    %v131 = vpack.c.bf16 %v115, %v113
    %v132 = vld [vmem:[%s2] sm:$0x3]
    %v134 = vlaneseq
    %v135 = vshrl.u32 %v134, 7
    %v136 = vsub.s32 0, %v135
    %v137 = vrot.slane %v132, %v136
    %v138 = vlaneseq
    %v139 = vshrl.u32 %v138, 7
    %v140 = vsub.s32 1, %v139
    %v141 = vrot.slane %v132, %v140
    %144 = vmatprep.subr.bf16.mxu0 %v117
    %145 = vmatpush1.bf16.msra.mxu0 %v116
    %146 = vmatprep.subr.bf16.mxu0 %v119
    %147 = vmatpush1.bf16.msra.mxu0 %v118
    %148 = vmatprep.subr.bf16.mxu0 %v121
    %149 = vmatpush1.bf16.msra.mxu0 %v120
    %150 = vmatprep.subr.bf16.mxu0 %v123
    %151 = vmatpush1.bf16.msra.mxu0 %v122
    %152 = vmatprep.subr.bf16.mxu0 %v125
    %153 = vmatpush1.bf16.msra.mxu0 %v124
    %154 = vmatprep.subr.bf16.mxu0 %v127
    %155 = vmatpush1.bf16.msra.mxu0 %v126
    %156 = vmatprep.subr.bf16.mxu0 %v129
    %157 = vmatpush1.bf16.msra.mxu0 %v128
    %158 = vmatprep.subr.bf16.mxu0 %v131
    %159 = vmatpush1.bf16.msra.mxu0 %v130
    %160 = vmatprep.subr.bf16.mxu0 0
    %161 = vmatpush1.bf16.msra.mxu0 0
    %162 = vmatprep.subr.bf16.mxu0 0
    %163 = vmatpush1.bf16.msra.mxu0 0
    %164 = vmatprep.subr.bf16.mxu0 0
    %165 = vmatpush1.bf16.msra.mxu0 0
    %166 = vmatprep.subr.bf16.mxu0 0
    %167 = vmatpush1.bf16.msra.mxu0 0
    %168 = vmatprep.subr.bf16.mxu0 0
    %169 = vmatpush1.bf16.msra.mxu0 0
    %170 = vmatprep.subr.bf16.mxu0 0
    %171 = vmatpush1.bf16.msra.mxu0 0
    %172 = vmatprep.subr.bf16.mxu0 0
    %173 = vmatpush1.bf16.msra.mxu0 0
    %174 = vmatprep.subr.bf16.mxu0 0
    %175 = vmatpush1.bf16.msra.mxu0 0
    %176 = vmatprep.mubr.bf16.mxu0 0
    %177 = vmatmul.mubr.bf16.gmra.mrb[0].mxu0 %v77
    %v178 = vpop.f32.mrb[0].mxu0
    %v179 = vadd.f32 %v137, %v178
    %v180 = vpop.f32.mrb[0].mxu0
    %v181 = vadd.f32 %v141, %v180
    %v182 = vpop.f32.mrb[0].mxu0
    %v183 = vadd.f32 %v137, %v182
    %v184 = vpop.f32.mrb[0].mxu0
    %v185 = vadd.f32 %v141, %v184
    %186 = vmatprep.mubr.bf16.mxu0 0
    %187 = vmatmul.mubr.bf16.gmra.mrb[0].mxu0 %v78
    %v188 = vpop.f32.mrb[0].mxu0
    %v189 = vadd.f32 %v137, %v188
    %v190 = vpop.f32.mrb[0].mxu0
    %v191 = vadd.f32 %v141, %v190
    %v192 = vpop.f32.mrb[0].mxu0
    %v193 = vadd.f32 %v137, %v192
    %v194 = vpop.f32.mrb[0].mxu0
    %v195 = vadd.f32 %v141, %v194
    %196 = vmatprep.mubr.bf16.mxu0 0
    %197 = vmatmul.mubr.bf16.gmra.mrb[0].mxu0 %v79
    %v198 = vpop.f32.mrb[0].mxu0
    %v199 = vadd.f32 %v137, %v198
    %v200 = vpop.f32.mrb[0].mxu0
    %v201 = vadd.f32 %v141, %v200
    %v202 = vpop.f32.mrb[0].mxu0
    %v203 = vadd.f32 %v137, %v202
    %v204 = vpop.f32.mrb[0].mxu0
    %v205 = vadd.f32 %v141, %v204
    %206 = vmatprep.mubr.bf16.mxu0 0
    %207 = vmatmul.mubr.bf16.gmra.mrb[0].mxu0 %v80
    %v208 = vpop.f32.mrb[0].mxu0
    %v209 = vadd.f32 %v137, %v208
    %v210 = vpop.f32.mrb[0].mxu0
    %v211 = vadd.f32 %v141, %v210
    %v212 = vpop.f32.mrb[0].mxu0
    %v213 = vadd.f32 %v137, %v212
    %v214 = vpop.f32.mrb[0].mxu0
    %v215 = vadd.f32 %v141, %v214
    %216 = vmatprep.mubr.bf16.mxu0 0
    %217 = vmatmul.mubr.bf16.gmra.mrb[0].mxu0 %v81
    %v218 = vpop.f32.mrb[0].mxu0
    %v219 = vadd.f32 %v137, %v218
    %v220 = vpop.f32.mrb[0].mxu0
    %v221 = vadd.f32 %v141, %v220
    %v222 = vpop.f32.mrb[0].mxu0
    %v223 = vadd.f32 %v137, %v222
    %v224 = vpop.f32.mrb[0].mxu0
    %v225 = vadd.f32 %v141, %v224
    %226 = vmatprep.mubr.bf16.mxu0 0
    %227 = vmatmul.mubr.bf16.gmra.mrb[0].mxu0 %v82
    %v228 = vpop.f32.mrb[0].mxu0
    %v229 = vadd.f32 %v137, %v228
    %v230 = vpop.f32.mrb[0].mxu0
    %v231 = vadd.f32 %v141, %v230
    %v232 = vpop.f32.mrb[0].mxu0
    %v233 = vadd.f32 %v137, %v232
    %v234 = vpop.f32.mrb[0].mxu0
    %v235 = vadd.f32 %v141, %v234
    %236 = vmatprep.mubr.bf16.mxu0 0
    %237 = vmatmul.mubr.bf16.gmra.mrb[0].mxu0 %v83
    %v238 = vpop.f32.mrb[0].mxu0
    %v239 = vadd.f32 %v137, %v238
    %v240 = vpop.f32.mrb[0].mxu0
    %v241 = vadd.f32 %v141, %v240
    %v242 = vpop.f32.mrb[0].mxu0
    %v243 = vadd.f32 %v137, %v242
    %v244 = vpop.f32.mrb[0].mxu0
    %v245 = vadd.f32 %v141, %v244
    %246 = vdwg.mxu0
    %v247 = vmul.f32 %v179, 0.5
    %v248 = vmul.f32 %v181, 0.5
    %v249 = vmul.f32 %v183, 0.5
    %v250 = vmul.f32 %v185, 0.5
    %v251 = vmul.f32 %v189, 0.5
    %v252 = vmul.f32 %v191, 0.5
    %v253 = vmul.f32 %v193, 0.5
    %v254 = vmul.f32 %v195, 0.5
    %v255 = vmul.f32 %v199, 0.5
    %v256 = vmul.f32 %v201, 0.5
    %v257 = vmul.f32 %v203, 0.5
    %v258 = vmul.f32 %v205, 0.5
    %v259 = vmul.f32 %v209, 0.5
    %v260 = vmul.f32 %v211, 0.5
    %v261 = vmul.f32 %v213, 0.5
    %v262 = vmul.f32 %v215, 0.5
    %v263 = vmul.f32 %v219, 0.5
    %v264 = vmul.f32 %v221, 0.5
    %v265 = vmul.f32 %v223, 0.5
    %v266 = vmul.f32 %v225, 0.5
    %v267 = vmul.f32 %v229, 0.5
    %v268 = vmul.f32 %v231, 0.5
    %v269 = vmul.f32 %v233, 0.5
    %v270 = vmul.f32 %v235, 0.5
    %v271 = vmul.f32 %v239, 0.5
    %v272 = vmul.f32 %v241, 0.5
    %v273 = vmul.f32 %v243, 0.5
    %v274 = vmul.f32 %v245, 0.5
    %v275 = vmul.f32 %v179, 0.70710677
    %v276 = vmul.f32 %v181, 0.70710677
    %v277 = vmul.f32 %v183, 0.70710677
    %v278 = vmul.f32 %v185, 0.70710677
    %v279 = vmul.f32 %v189, 0.70710677
    %v280 = vmul.f32 %v191, 0.70710677
    %v281 = vmul.f32 %v193, 0.70710677
    %v282 = vmul.f32 %v195, 0.70710677
    %v283 = vmul.f32 %v199, 0.70710677
    %v284 = vmul.f32 %v201, 0.70710677
    %v285 = vmul.f32 %v203, 0.70710677
    %v286 = vmul.f32 %v205, 0.70710677
    %v287 = vmul.f32 %v209, 0.70710677
    %v288 = vmul.f32 %v211, 0.70710677
    %v289 = vmul.f32 %v213, 0.70710677
    %v290 = vmul.f32 %v215, 0.70710677
    %v291 = vmul.f32 %v219, 0.70710677
    %v292 = vmul.f32 %v221, 0.70710677
    %v293 = vmul.f32 %v223, 0.70710677
    %v294 = vmul.f32 %v225, 0.70710677
    %v295 = vmul.f32 %v229, 0.70710677
    %v296 = vmul.f32 %v231, 0.70710677
    %v297 = vmul.f32 %v233, 0.70710677
    %v298 = vmul.f32 %v235, 0.70710677
    %v299 = vmul.f32 %v239, 0.70710677
    %v300 = vmul.f32 %v241, 0.70710677
    %v301 = vmul.f32 %v243, 0.70710677
    %v302 = vmul.f32 %v245, 0.70710677
    %v303 = verf.f32.pop %v275
    %v304 = verf.f32.pop %v276
    %v305 = verf.f32.pop %v277
    %v306 = verf.f32.pop %v278
    %v307 = verf.f32.pop %v279
    %v308 = verf.f32.pop %v280
    %v309 = verf.f32.pop %v281
    %v310 = verf.f32.pop %v282
    %v311 = verf.f32.pop %v283
    %v312 = verf.f32.pop %v284
    %v313 = verf.f32.pop %v285
    %v314 = verf.f32.pop %v286
    %v315 = verf.f32.pop %v287
    %v316 = verf.f32.pop %v288
    %v317 = verf.f32.pop %v289
    %v318 = verf.f32.pop %v290
    %v319 = verf.f32.pop %v291
    %v320 = verf.f32.pop %v292
    %v321 = verf.f32.pop %v293
    %v322 = verf.f32.pop %v294
    %v323 = verf.f32.pop %v295
    %v324 = verf.f32.pop %v296
    %v325 = verf.f32.pop %v297
    %v326 = verf.f32.pop %v298
    %v327 = verf.f32.pop %v299
    %v328 = verf.f32.pop %v300
    %v329 = verf.f32.pop %v301
    %v330 = verf.f32.pop %v302
    %v331 = vadd.f32 %v303, 1.0
    %v332 = vadd.f32 %v304, 1.0
    %v333 = vadd.f32 %v305, 1.0
    %v334 = vadd.f32 %v306, 1.0
    %v335 = vadd.f32 %v307, 1.0
    %v336 = vadd.f32 %v308, 1.0
    %v337 = vadd.f32 %v309, 1.0
    %v338 = vadd.f32 %v310, 1.0
    %v339 = vadd.f32 %v311, 1.0
    %v340 = vadd.f32 %v312, 1.0
    %v341 = vadd.f32 %v313, 1.0
    %v342 = vadd.f32 %v314, 1.0
    %v343 = vadd.f32 %v315, 1.0
    %v344 = vadd.f32 %v316, 1.0
    %v345 = vadd.f32 %v317, 1.0
    %v346 = vadd.f32 %v318, 1.0
    %v347 = vadd.f32 %v319, 1.0
    %v348 = vadd.f32 %v320, 1.0
    %v349 = vadd.f32 %v321, 1.0
    %v350 = vadd.f32 %v322, 1.0
    %v351 = vadd.f32 %v323, 1.0
    %v352 = vadd.f32 %v324, 1.0
    %v353 = vadd.f32 %v325, 1.0
    %v354 = vadd.f32 %v326, 1.0
    %v355 = vadd.f32 %v327, 1.0
    %v356 = vadd.f32 %v328, 1.0
    %v357 = vadd.f32 %v329, 1.0
    %v358 = vadd.f32 %v330, 1.0
    %v359 = vmul.f32 %v247, %v331
    %v360 = vmul.f32 %v248, %v332
    %v361 = vmul.f32 %v249, %v333
    %v362 = vmul.f32 %v250, %v334
    %v363 = vmul.f32 %v251, %v335
    %v364 = vmul.f32 %v252, %v336
    %v365 = vmul.f32 %v253, %v337
    %v366 = vmul.f32 %v254, %v338
    %v367 = vmul.f32 %v255, %v339
    %v368 = vmul.f32 %v256, %v340
    %v369 = vmul.f32 %v257, %v341
    %v370 = vmul.f32 %v258, %v342
    %v371 = vmul.f32 %v259, %v343
    %v372 = vmul.f32 %v260, %v344
    %v373 = vmul.f32 %v261, %v345
    %v374 = vmul.f32 %v262, %v346
    %v375 = vmul.f32 %v263, %v347
    %v376 = vmul.f32 %v264, %v348
    %v377 = vmul.f32 %v265, %v349
    %v378 = vmul.f32 %v266, %v350
    %v379 = vmul.f32 %v267, %v351
    %v380 = vmul.f32 %v268, %v352
    %v381 = vmul.f32 %v269, %v353
    %v382 = vmul.f32 %v270, %v354
    %v383 = vmul.f32 %v271, %v355
    %v384 = vmul.f32 %v272, %v356
    %v385 = vmul.f32 %v273, %v357
    %v386 = vmul.f32 %v274, %v358
    %v387 = vpack.c.bf16 %v361, %v359
    %v388 = vpack.c.bf16 %v362, %v360
    %v389 = vpack.c.bf16 %v365, %v363
    %v390 = vpack.c.bf16 %v366, %v364
    %v391 = vpack.c.bf16 %v369, %v367
    %v392 = vpack.c.bf16 %v370, %v368
    %v393 = vpack.c.bf16 %v373, %v371
    %v394 = vpack.c.bf16 %v374, %v372
    %v395 = vpack.c.bf16 %v377, %v375
    %v396 = vpack.c.bf16 %v378, %v376
    %v397 = vpack.c.bf16 %v381, %v379
    %v398 = vpack.c.bf16 %v382, %v380
    %v399 = vpack.c.bf16 %v385, %v383
    %v400 = vpack.c.bf16 %v386, %v384
    %v401 = vld [vmem:[#allocation7] sm:$0xff]
    %v402 = vld [vmem:[#allocation7 + $0x8] sm:$0xff]
    %v403 = vld [vmem:[#allocation7 + $0x10] sm:$0xff]
    %v404 = vld [vmem:[#allocation7 + $0x18] sm:$0xff]
    %v405 = vld [vmem:[#allocation7 + $0x20] sm:$0xff]
    %v406 = vld [vmem:[#allocation7 + $0x28] sm:$0xff]
    %v407 = vld [vmem:[#allocation7 + $0x30] sm:$0xff]
    %v408 = vld [vmem:[#allocation7 + $0x38] sm:$0xff]
    %v409 = vld [vmem:[#allocation7 + $0x40] sm:$0xff]
    %v410 = vld [vmem:[#allocation7 + $0x48] sm:$0xff]
    %v411 = vld [vmem:[#allocation7 + $0x50] sm:$0xff]
    %v412 = vld [vmem:[#allocation7 + $0x58] sm:$0xff]
    %v413 = vld [vmem:[#allocation7 + $0x60] sm:$0xff]
    %v414 = vld [vmem:[#allocation7 + $0x68] sm:$0xff]
    %v415 = vld [vmem:[#allocation7 + $0x70] sm:$0xff]
    %v416 = vld [vmem:[#allocation7 + $0x78] sm:$0xff]
    %v417 = vld [vmem:[#allocation7 + $0x80] sm:$0xff]
    %v418 = vld [vmem:[#allocation7 + $0x88] sm:$0xff]
    %v419 = vld [vmem:[#allocation7 + $0x90] sm:$0xff]
    %v420 = vld [vmem:[#allocation7 + $0x98] sm:$0xff]
    %v421 = vld [vmem:[#allocation7 + $0xa0] sm:$0xff]
    %v422 = vld [vmem:[#allocation7 + $0xa8] sm:$0xff]
    %v423 = vld [vmem:[#allocation7 + $0xb0] sm:$0xff]
    %v424 = vld [vmem:[#allocation7 + $0xb8] sm:$0xff]
    %v425 = vld [vmem:[#allocation7 + $0xc0] sm:$0xff]
    %v426 = vld [vmem:[#allocation7 + $0xc8] sm:$0xff]
    %v427 = vld [vmem:[#allocation7 + $0xd0] sm:$0xff]
    %v428 = vld [vmem:[#allocation7 + $0xd8] sm:$0xff]
    %v429 = vld [vmem:[#allocation7 + $0xe0] sm:$0xff]
    %v430 = vld [vmem:[#allocation7 + $0xe8] sm:$0xff]
    %v431 = vld [vmem:[#allocation7 + $0xf0] sm:$0xff]
    %v432 = vld [vmem:[#allocation7 + $0xf8] sm:$0xff]
    %v433 = vld [vmem:[#allocation7 + $0x100] sm:$0xff]
    %v434 = vld [vmem:[#allocation7 + $0x108] sm:$0xff]
    %v435 = vld [vmem:[#allocation7 + $0x110] sm:$0xff]
    %v436 = vld [vmem:[#allocation7 + $0x118] sm:$0xff]
    %v437 = vld [vmem:[#allocation7 + $0x120] sm:$0xff]
    %v438 = vld [vmem:[#allocation7 + $0x128] sm:$0xff]
    %v439 = vld [vmem:[#allocation7 + $0x130] sm:$0xff]
    %v440 = vld [vmem:[#allocation7 + $0x138] sm:$0xff]
    %v441 = vld [vmem:[#allocation7 + $0x140] sm:$0xff]
    %v442 = vld [vmem:[#allocation7 + $0x148] sm:$0xff]
    %v443 = vld [vmem:[#allocation7 + $0x150] sm:$0xff]
    %v444 = vld [vmem:[#allocation7 + $0x158] sm:$0xff]
    %v445 = vld [vmem:[#allocation7 + $0x160] sm:$0xff]
    %v446 = vld [vmem:[#allocation7 + $0x168] sm:$0xff]
    %v447 = vld [vmem:[#allocation7 + $0x170] sm:$0xff]
    %v448 = vld [vmem:[#allocation7 + $0x178] sm:$0xff]
    %v449 = vld [vmem:[#allocation7 + $0x180] sm:$0xff]
    %v450 = vld [vmem:[#allocation7 + $0x188] sm:$0xff]
    %v451 = vld [vmem:[#allocation7 + $0x190] sm:$0xff]
    %v452 = vld [vmem:[#allocation7 + $0x198] sm:$0xff]
    %v453 = vld [vmem:[#allocation7 + $0x1a0] sm:$0xff]
    %v454 = vld [vmem:[#allocation7 + $0x1a8] sm:$0xff]
    %v455 = vld [vmem:[#allocation7 + $0x1b0] sm:$0xff]
    %v456 = vld [vmem:[#allocation7 + $0x1b8] sm:$0xff]
    %v457 = vld [vmem:[#allocation7 + $0x1c0] sm:$0xff]
    %v458 = vld [vmem:[#allocation7 + $0x1c8] sm:$0xff]
    %v459 = vld [vmem:[#allocation7 + $0x1d0] sm:$0xff]
    %v460 = vld [vmem:[#allocation7 + $0x1d8] sm:$0xff]
    %v461 = vld [vmem:[#allocation7 + $0x1e0] sm:$0xff]
    %v462 = vld [vmem:[#allocation7 + $0x1e8] sm:$0xff]
    %v463 = vld [vmem:[#allocation7 + $0x1f0] sm:$0xff]
    %v464 = vld [vmem:[#allocation7 + $0x1f8] sm:$0xff]
    %v465 = vpack.c.bf16 %v403, %v401
    %v466 = vpack.c.bf16 %v404, %v402
    %v467 = vpack.c.bf16 %v407, %v405
    %v468 = vpack.c.bf16 %v408, %v406
    %v469 = vpack.c.bf16 %v411, %v409
    %v470 = vpack.c.bf16 %v412, %v410
    %v471 = vpack.c.bf16 %v415, %v413
    %v472 = vpack.c.bf16 %v416, %v414
    %v473 = vpack.c.bf16 %v419, %v417
    %v474 = vpack.c.bf16 %v420, %v418
    %v475 = vpack.c.bf16 %v423, %v421
    %v476 = vpack.c.bf16 %v424, %v422
    %v477 = vpack.c.bf16 %v427, %v425
    %v478 = vpack.c.bf16 %v428, %v426
    %v479 = vpack.c.bf16 %v431, %v429
    %v480 = vpack.c.bf16 %v432, %v430
    %v481 = vpack.c.bf16 %v435, %v433
    %v482 = vpack.c.bf16 %v436, %v434
    %v483 = vpack.c.bf16 %v439, %v437
    %v484 = vpack.c.bf16 %v440, %v438
    %v485 = vpack.c.bf16 %v443, %v441
    %v486 = vpack.c.bf16 %v444, %v442
    %v487 = vpack.c.bf16 %v447, %v445
    %v488 = vpack.c.bf16 %v448, %v446
    %v489 = vpack.c.bf16 %v451, %v449
    %v490 = vpack.c.bf16 %v452, %v450
    %v491 = vpack.c.bf16 %v455, %v453
    %v492 = vpack.c.bf16 %v456, %v454
    %v493 = vpack.c.bf16 %v459, %v457
    %v494 = vpack.c.bf16 %v460, %v458
    %v495 = vpack.c.bf16 %v463, %v461
    %v496 = vpack.c.bf16 %v464, %v462
    %v497 = vld [vmem:[%s4] sm:$0x3]
    %v499 = vlaneseq
    %v500 = vshrl.u32 %v499, 7
    %v501 = vsub.s32 0, %v500
    %v502 = vrot.slane %v497, %v501
    %v503 = vlaneseq
    %v504 = vshrl.u32 %v503, 7
    %v505 = vsub.s32 1, %v504
    %v506 = vrot.slane %v497, %v505
    %509 = vmatprep.subr.bf16.mxu0 %v466
    %510 = vmatpush1.bf16.msra.mxu0 %v465
    %511 = vmatprep.subr.bf16.mxu0 %v468
    %512 = vmatpush1.bf16.msra.mxu0 %v467
    %513 = vmatprep.subr.bf16.mxu0 %v470
    %514 = vmatpush1.bf16.msra.mxu0 %v469
    %515 = vmatprep.subr.bf16.mxu0 %v472
    %516 = vmatpush1.bf16.msra.mxu0 %v471
    %517 = vmatprep.subr.bf16.mxu0 %v474
    %518 = vmatpush1.bf16.msra.mxu0 %v473
    %519 = vmatprep.subr.bf16.mxu0 %v476
    %520 = vmatpush1.bf16.msra.mxu0 %v475
    %521 = vmatprep.subr.bf16.mxu0 %v478
    %522 = vmatpush1.bf16.msra.mxu0 %v477
    %523 = vmatprep.subr.bf16.mxu0 %v480
    %524 = vmatpush1.bf16.msra.mxu0 %v479
    %525 = vmatprep.subr.bf16.mxu0 %v482
    %526 = vmatpush1.bf16.msra.mxu0 %v481
    %527 = vmatprep.subr.bf16.mxu0 %v484
    %528 = vmatpush1.bf16.msra.mxu0 %v483
    %529 = vmatprep.subr.bf16.mxu0 %v486
    %530 = vmatpush1.bf16.msra.mxu0 %v485
    %531 = vmatprep.subr.bf16.mxu0 %v488
    %532 = vmatpush1.bf16.msra.mxu0 %v487
    %533 = vmatprep.subr.bf16.mxu0 %v490
    %534 = vmatpush1.bf16.msra.mxu0 %v489
    %535 = vmatprep.subr.bf16.mxu0 %v492
    %536 = vmatpush1.bf16.msra.mxu0 %v491
    %537 = vmatprep.subr.bf16.mxu0 %v494
    %538 = vmatpush1.bf16.msra.mxu0 %v493
    %539 = vmatprep.subr.bf16.mxu0 %v496
    %540 = vmatpush1.bf16.msra.mxu0 %v495
    %541 = vmatprep.mubr.bf16.mxu0 %v388
    %542 = vmatmul.mubr.bf16.gmra.mrb[0].mxu0 %v387
    %v543 = vpop.f32.mrb[0].mxu0
    %v544 = vadd.f32 %v502, %v543
    %v545 = vpop.f32.mrb[0].mxu0
    %v546 = vadd.f32 %v506, %v545
    %v547 = vpop.f32.mrb[0].mxu0
    %v548 = vadd.f32 %v502, %v547
    %v549 = vpop.f32.mrb[0].mxu0
    %v550 = vadd.f32 %v506, %v549
    %551 = vmatprep.mubr.bf16.mxu0 %v390
    %552 = vmatmul.mubr.bf16.gmra.mrb[0].mxu0 %v389
    %v553 = vpop.f32.mrb[0].mxu0
    %v554 = vadd.f32 %v502, %v553
    %v555 = vpop.f32.mrb[0].mxu0
    %v556 = vadd.f32 %v506, %v555
    %v557 = vpop.f32.mrb[0].mxu0
    %v558 = vadd.f32 %v502, %v557
    %v559 = vpop.f32.mrb[0].mxu0
    %v560 = vadd.f32 %v506, %v559
    %561 = vmatprep.mubr.bf16.mxu0 %v392
    %562 = vmatmul.mubr.bf16.gmra.mrb[0].mxu0 %v391
    %v563 = vpop.f32.mrb[0].mxu0
    %v564 = vadd.f32 %v502, %v563
    %v565 = vpop.f32.mrb[0].mxu0
    %v566 = vadd.f32 %v506, %v565
    %v567 = vpop.f32.mrb[0].mxu0
    %v568 = vadd.f32 %v502, %v567
    %v569 = vpop.f32.mrb[0].mxu0
    %v570 = vadd.f32 %v506, %v569
    %571 = vmatprep.mubr.bf16.mxu0 %v394
    %572 = vmatmul.mubr.bf16.gmra.mrb[0].mxu0 %v393
    %v573 = vpop.f32.mrb[0].mxu0
    %v574 = vadd.f32 %v502, %v573
    %v575 = vpop.f32.mrb[0].mxu0
    %v576 = vadd.f32 %v506, %v575
    %v577 = vpop.f32.mrb[0].mxu0
    %v578 = vadd.f32 %v502, %v577
    %v579 = vpop.f32.mrb[0].mxu0
    %v580 = vadd.f32 %v506, %v579
    %581 = vmatprep.mubr.bf16.mxu0 %v396
    %582 = vmatmul.mubr.bf16.gmra.mrb[0].mxu0 %v395
    %v583 = vpop.f32.mrb[0].mxu0
    %v584 = vadd.f32 %v502, %v583
    %v585 = vpop.f32.mrb[0].mxu0
    %v586 = vadd.f32 %v506, %v585
    %v587 = vpop.f32.mrb[0].mxu0
    %v588 = vadd.f32 %v502, %v587
    %v589 = vpop.f32.mrb[0].mxu0
    %v590 = vadd.f32 %v506, %v589
    %591 = vmatprep.mubr.bf16.mxu0 %v398
    %592 = vmatmul.mubr.bf16.gmra.mrb[0].mxu0 %v397
    %v593 = vpop.f32.mrb[0].mxu0
    %v594 = vadd.f32 %v502, %v593
    %v595 = vpop.f32.mrb[0].mxu0
    %v596 = vadd.f32 %v506, %v595
    %v597 = vpop.f32.mrb[0].mxu0
    %v598 = vadd.f32 %v502, %v597
    %v599 = vpop.f32.mrb[0].mxu0
    %v600 = vadd.f32 %v506, %v599
    %601 = vmatprep.mubr.bf16.mxu0 %v400
    %602 = vmatmul.mubr.bf16.gmra.mrb[0].mxu0 %v399
    %v603 = vpop.f32.mrb[0].mxu0
    %v604 = vadd.f32 %v502, %v603
    %v605 = vpop.f32.mrb[0].mxu0
    %v606 = vadd.f32 %v506, %v605
    %v607 = vpop.f32.mrb[0].mxu0
    %v608 = vadd.f32 %v502, %v607
    %v609 = vpop.f32.mrb[0].mxu0
    %v610 = vadd.f32 %v506, %v609
    %611 = vdwg.mxu0
    %612 = vst [vmem:[#allocation8] sm:$0xff] %v544
    %613 = vst [vmem:[#allocation8 + $0x8] sm:$0xff] %v546
    %614 = vst [vmem:[#allocation8 + $0x10] sm:$0xff] %v548
    %615 = vst [vmem:[#allocation8 + $0x18] sm:$0xff] %v550
    %616 = vst [vmem:[#allocation8 + $0x20] sm:$0xff] %v554
    %617 = vst [vmem:[#allocation8 + $0x28] sm:$0xff] %v556
    %618 = vst [vmem:[#allocation8 + $0x30] sm:$0xff] %v558
    %619 = vst [vmem:[#allocation8 + $0x38] sm:$0xff] %v560
    %620 = vst [vmem:[#allocation8 + $0x40] sm:$0xff] %v564
    %621 = vst [vmem:[#allocation8 + $0x48] sm:$0xff] %v566
    %622 = vst [vmem:[#allocation8 + $0x50] sm:$0xff] %v568
    %623 = vst [vmem:[#allocation8 + $0x58] sm:$0xff] %v570
    %624 = vst [vmem:[#allocation8 + $0x60] sm:$0xff] %v574
    %625 = vst [vmem:[#allocation8 + $0x68] sm:$0xff] %v576
    %626 = vst [vmem:[#allocation8 + $0x70] sm:$0xff] %v578
    %627 = vst [vmem:[#allocation8 + $0x78] sm:$0xff] %v580
    %628 = vst [vmem:[#allocation8 + $0x80] sm:$0xff] %v584
    %629 = vst [vmem:[#allocation8 + $0x88] sm:$0xff] %v586
    %630 = vst [vmem:[#allocation8 + $0x90] sm:$0xff] %v588
    %631 = vst [vmem:[#allocation8 + $0x98] sm:$0xff] %v590
    %632 = vst [vmem:[#allocation8 + $0xa0] sm:$0xff] %v594
    %633 = vst [vmem:[#allocation8 + $0xa8] sm:$0xff] %v596
    %634 = vst [vmem:[#allocation8 + $0xb0] sm:$0xff] %v598
    %635 = vst [vmem:[#allocation8 + $0xb8] sm:$0xff] %v600
    %636 = vst [vmem:[#allocation8 + $0xc0] sm:$0xff] %v604
    %637 = vst [vmem:[#allocation8 + $0xc8] sm:$0xff] %v606
    %638 = vst [vmem:[#allocation8 + $0xd0] sm:$0xff] %v608
    %639 = vst [vmem:[#allocation8 + $0xd8] sm:$0xff] %v610
    // Predicated region
    $region34: #{projection_head.1} parent=1 // pred_check
      _
    $region35: #{projection_head.1} parent=1 // pred_check_branch
      %641 = sbr.rel (0) target = $region37
    $region36: #{projection_head.1} parent=1 // pred_region
      %s643 = ssub.s32 3584, 3328
      %644 = vsyncadd [#allocation4], %s643
      %s645 = sshll.u32 [#allocation8], 4
      %s646 = int_to_ptr.vmem [resolvable:$true] %s645
      %651 = dma.vmem_to_hbm [thread:$0]  %s646, 3328, %s5, [#allocation4], 256, 256, 16
    $region37: #{projection_head.1} parent=1 // pred_fallthru
      _
    // Predicated region
    $region38: #{projection_head.1} parent=1 // pred_check
      _
    $region39: #{projection_head.1} parent=1 // pred_check_branch
      %653 = sbr.rel (0) target = $region41
    $region40: #{projection_head.1} parent=1 // pred_region
      %654 = dma.done [#allocation4], 3584
    $region41: #{projection_head.1} parent=1 // pred_fallthru
      _
    %655 = vsyncpa [#allocation3], 1
    %656 = vsyncpa [#allocation6], 1
    %657 = vsyncpa [#allocation4], 1

</llo_original>
